<compile_context>
chip_gen: v7x
topology: tpu7x:2x2x1
jax: 0.10.0
libtpu: 0.0.40
codegen_flags: <defaults>
</compile_context>

<pallas_src>
import numpy as np
import jax
import jax.numpy as jnp
from jax.experimental import pallas as pl
from jax.experimental.pallas import tpu as pltpu


LEAKY_SLOPE = 0.05


def _leaky(h):
    # LeakyReLU(negative_slope=0.05), f32 VPU work.
    return jnp.where(h > 0, h, jnp.float32(LEAKY_SLOPE) * h)


def _round_up(n, m):
    return (n + m - 1) // m * m


# ----------------------------------------------------------------------------- kernel

def make_mft_kernel(num_hidden_layers: int):
    """Kernel refs: x, [W_l, b_l] for every hidden layer, W_out, b_out, out.

    Shapes inside the kernel (F = #features, TB = batch tile, H = hidden width):
      x      : (TB, F)            f32
      W_0    : (F, F*H0)          bf16   b_0 : (1, F*H0) f32
      W_l    : (F*H_in, F*H_out)  bf16   b_l : (1, F*H_out) f32
      W_out  : (F*H_last, F)      bf16   b_out : (1, F) f32
      out    : (TB, F)            f32
    All weight matrices are block-diagonal expansions of the per-feature layers,
    so per-feature independence is preserved exactly.
    """
    nl = num_hidden_layers

    def kernel(*refs):
        x_ref = refs[0]
        o_ref = refs[-1]
        p = refs[1:-1]

        h = x_ref[...].astype(jnp.float32)                               # (TB, F)

        # Hidden layers: one fused block-diagonal matmul each (bf16 in, f32 acc).
        for l in range(nl):
            W = p[2 * l][...]                                            # bf16
            b = p[2 * l + 1][...].astype(jnp.float32)                    # (1, d_out)
            h = jnp.dot(h.astype(W.dtype), W,
                        preferred_element_type=jnp.float32)              # (TB, d_out)
            h = _leaky(h + b)

        # Output layer: (TB, F*H_last) @ (F*H_last, F) + bias.
        Wo = p[2 * nl][...]
        bo = p[2 * nl + 1][...].astype(jnp.float32)                      # (1, F)
        out = jnp.dot(h.astype(Wo.dtype), Wo,
                      preferred_element_type=jnp.float32) + bo           # (TB, F)

        o_ref[...] = out.astype(o_ref.dtype)

    return kernel


# ----------------------------------------------------------------------- param packing

def init_params(key, in_features, linear_layers):
    """Per-feature parameters in f32 (mirrors the stacked PyTorch FeatureTransformers)."""
    F = in_features
    nl = len(linear_layers)
    keys = jax.random.split(key, 2 * (nl + 1))
    scale = jnp.float32(0.3)

    H0 = linear_layers[0]
    w0 = scale * jax.random.normal(keys[0], (F, H0), jnp.float32)
    b0 = scale * jax.random.normal(keys[1], (F, H0), jnp.float32)

    middles = []
    h_in = H0
    for l, h_out in enumerate(linear_layers[1:], start=1):
        W = scale * jax.random.normal(keys[2 * l], (F, h_in, h_out), jnp.float32)
        b = scale * jax.random.normal(keys[2 * l + 1], (F, h_out), jnp.float32)
        middles.append((W, b))
        h_in = h_out

    wo = scale * jax.random.normal(keys[2 * nl], (F, h_in), jnp.float32)
    bo = scale * jax.random.normal(keys[2 * nl + 1], (F, 1), jnp.float32)
    return (w0, b0, middles, wo, bo)


def pack_params(params, mxu_dtype=jnp.bfloat16):
    """Pack per-feature layers into block-diagonal kernel operands (done once).

    Weight matrices (MXU operands) are cast to bf16; biases stay f32.
    NOTE (v7x): mxu_dtype could be an fp8 type there if the accuracy budget allows;
    keep bf16 on v5e/v6e (their alt MXU formats are int8/int4, not fp8).
    """
    w0, b0, middles, wo, bo = params
    F, H0 = w0.shape
    eye = jnp.eye(F, dtype=jnp.float32)

    ops = []
    # Layer 0: scalar -> H0 per feature.  W0exp[f, f*H0 + j] = w0[f, j].
    W0exp = jnp.einsum("fj,fg->fgj", w0, eye).reshape(F, F * H0)
    ops += [W0exp.astype(mxu_dtype), b0.reshape(1, F * H0)]

    # Middle layers: Wbd[f*Hi + i, f*Ho + o] = W[f, i, o].
    for W, b in middles:
        _, Hi, Ho = W.shape
        Wbd = jnp.einsum("fio,fg->figo", W, eye).reshape(F * Hi, F * Ho)
        ops += [Wbd.astype(mxu_dtype), b.reshape(1, F * Ho)]

    # Output layer: WoExp[f*H + i, f] = wo[f, i];  bias (1, F).
    Hl = wo.shape[1]
    WoExp = jnp.einsum("fi,fg->gif", wo, eye).reshape(F * Hl, F)
    ops += [WoExp.astype(mxu_dtype), bo.reshape(1, F)]
    return ops


# ----------------------------------------------------------------------------- wrapper

def _choose_tb(B):
    """Batch tile: multiple of 8 (f32 sublane).  For large B use big tiles (up to
    2048) to amortize per-grid-step overhead, but keep >=2 grid steps so the
    "parallel" batch axis can shard across v7x's 2 TensorCores."""
    if B < 256:
        return _round_up(B, 8)
    tb = min(2048, _round_up(B, 128) // 2)
    return max(128, tb // 128 * 128)


def multi_feature_transformer_forward(x, packed_ops):
    """x: (B, 1, F).  packed_ops: output of pack_params()."""
    B, one, F = x.shape
    assert one == 1, "MultiFeatureTransformer.forward implies input shape (B, 1, F)"

    TB = _choose_tb(B)
    B_pad = _round_up(B, TB)

    # (B, 1, F) -> (B, F) is a free reshape (contiguous); only a zero batch-pad is
    # added when B is not a multiple of TB.  No HBM transposes.
    x2 = x.reshape(B, F).astype(jnp.float32)
    if B_pad != B:
        x2 = jnp.pad(x2, ((0, B_pad - B), (0, 0)))

    nl = (len(packed_ops) - 2) // 2
    operands = [x2] + list(packed_ops)

    def resident_spec(a):
        # Full-shape block, constant index_map: stays resident in VMEM across all
        # batch grid steps (Pallas skips the DMA when the block index is unchanged).
        return pl.BlockSpec(a.shape, lambda i: (0, 0))

    in_specs = [pl.BlockSpec((TB, F), lambda i: (i, 0))]
    in_specs += [resident_spec(a) for a in packed_ops]

    out = pl.pallas_call(
        make_mft_kernel(nl),
        grid=(B_pad // TB,),
        out_shape=jax.ShapeDtypeStruct((B_pad, F), jnp.float32),
        in_specs=in_specs,
        out_specs=pl.BlockSpec((TB, F), lambda i: (i, 0)),
        compiler_params=pltpu.CompilerParams(
            dimension_semantics=("parallel",)),   # megacore sharding on v7x
    )(*operands)

    return out[:B].reshape(B, 1, F).astype(x.dtype)


# ----------------------------------------------------------------------- pure-numpy ref

def _bf16_round(a):
    return np.asarray(jnp.asarray(a, jnp.float32).astype(jnp.bfloat16).astype(jnp.float32))


def reference_forward(x, params):
    """Brute-force per-feature loop mirroring the PyTorch module.  Weights are
    bf16-rounded (as the kernel sees them); activations stay f32, so the kernel's
    bf16 activation rounding at each matmul is the only residual error."""
    w0, b0, middles, wo, bo = params
    x = np.asarray(x, np.float32)
    B, one, F = x.shape
    w0 = _bf16_round(w0)
    wo = _bf16_round(wo)
    b0 = np.asarray(b0, np.float32)
    bo = np.asarray(bo, np.float32)
    mids = [(_bf16_round(W), np.asarray(b, np.float32)) for W, b in middles]

    y = np.zeros_like(x)
    for f in range(F):
        h = x[:, :, f].reshape(-1, 1)                       # feat_batch, (B*1, 1)
        h = h @ w0[f].reshape(1, -1) + b0[f]                # Linear(1, H0)
        h = np.where(h > 0, h, LEAKY_SLOPE * h)
        for W, b in mids:
            h = h @ W[f] + b[f]                             # Linear(H_in, H_out)
            h = np.where(h > 0, h, LEAKY_SLOPE * h)
        out = h @ wo[f].reshape(-1, 1) + bo[f]              # Linear(H_last, 1)
        y[:, :, f] = out.reshape(B, one)
    return y


# ----------------------------------------------------------------------------- main

if __name__ == "__main__":
    in_features = 16             # F: number of per-feature MLPs
    linear_layers = [32, 32]     # hidden widths of each FeatureTransformer
    B = 2                        # batch; the torch forward implies x of shape (B, 1, F)

    key = jax.random.PRNGKey(0)
    k_params, k_x = jax.random.split(key)
    params = init_params(k_params, in_features, linear_layers)
    packed = pack_params(params)
    x = jax.random.normal(k_x, (B, 1, in_features), jnp.float32)

    out = multi_feature_transformer_forward(x, packed)
    out = jax.block_until_ready(out)

    ref = reference_forward(x, params)
    assert out.shape == ref.shape, (out.shape, ref.shape)
    # bf16 MXU operands (activations cast to bf16 at each matmul) with f32
    # accumulation -> slightly loosened tolerance vs the all-f32 reference.
    np.testing.assert_allclose(np.asarray(out), ref, rtol=2e-2, atol=2e-2)

    print("KERNEL_OK")
</pallas_src>

<mosaic_0001>
module attributes {stable_mosaic.version = 11 : i64} {
  func.func @kernel(%arg0: i32, %arg1: memref<8x16xf32, #tpu.memory_space<vmem>>, %arg2: memref<16x512xbf16, #tpu.memory_space<vmem>>, %arg3: memref<1x512xf32, #tpu.memory_space<vmem>>, %arg4: memref<512x512xbf16, #tpu.memory_space<vmem>>, %arg5: memref<1x512xf32, #tpu.memory_space<vmem>>, %arg6: memref<512x16xbf16, #tpu.memory_space<vmem>>, %arg7: memref<1x16xf32, #tpu.memory_space<vmem>>, %arg8: memref<8x16xf32, #tpu.memory_space<vmem>>) attributes {dimension_semantics = [#tpu.dimension_semantics<parallel>], iteration_bounds = array<i64: 1>, scalar_prefetch = 0 : i64, scratch_operands = 0 : i64, tpu.core_type = #tpu.core_type<tc>, window_params = [{transform_indices = @transform_0, window_bounds = array<i64: 8, 16>}, {pipeline_mode = #tpu.pipeline_mode<synchronous>, transform_indices = @transform_1, window_bounds = array<i64: 16, 512>}, {pipeline_mode = #tpu.pipeline_mode<synchronous>, transform_indices = @transform_2, window_bounds = array<i64: 1, 512>}, {pipeline_mode = #tpu.pipeline_mode<synchronous>, transform_indices = @transform_3, window_bounds = array<i64: 512, 512>}, {pipeline_mode = #tpu.pipeline_mode<synchronous>, transform_indices = @transform_4, window_bounds = array<i64: 1, 512>}, {pipeline_mode = #tpu.pipeline_mode<synchronous>, transform_indices = @transform_5, window_bounds = array<i64: 512, 16>}, {pipeline_mode = #tpu.pipeline_mode<synchronous>, transform_indices = @transform_6, window_bounds = array<i64: 1, 16>}, {transform_indices = @transform_7, window_bounds = array<i64: 8, 16>}]} {
    %c0 = arith.constant 0 : index
    %c0_0 = arith.constant 0 : index
    %0 = vector.load %arg1[%c0, %c0_0] : memref<8x16xf32, #tpu.memory_space<vmem>>, vector<8x16xf32>
    %c0_1 = arith.constant 0 : index
    %c0_2 = arith.constant 0 : index
    %1 = vector.load %arg2[%c0_1, %c0_2] : memref<16x512xbf16, #tpu.memory_space<vmem>>, vector<16x512xbf16>
    %c0_3 = arith.constant 0 : index
    %c0_4 = arith.constant 0 : index
    %2 = vector.load %arg3[%c0_3, %c0_4] : memref<1x512xf32, #tpu.memory_space<vmem>>, vector<1x512xf32>
    %3 = arith.truncf %0 : vector<8x16xf32> to vector<8x16xbf16>
    %cst = arith.constant dense<0.000000e+00> : vector<8x512xf32>
    %4 = tpu.matmul %3, %1, %cst {dimension_numbers = #tpu.dot_dimension_numbers<[1], [0], [0], [1], [0, 0, 1, 1], [], []>} : vector<8x16xbf16>, vector<16x512xbf16>, vector<8x512xf32> -> vector<8x512xf32>
    %5 = vector.broadcast %2 : vector<1x512xf32> to vector<8x512xf32>
    %6 = arith.addf %4, %5 : vector<8x512xf32>
    %cst_5 = arith.constant 0.000000e+00 : f32
    %7 = vector.broadcast %cst_5 : f32 to vector<8x512xf32>
    %8 = arith.cmpf ogt, %6, %7 : vector<8x512xf32>
    %cst_6 = arith.constant 5.000000e-02 : f32
    %9 = vector.broadcast %cst_6 : f32 to vector<8x512xf32>
    %10 = arith.mulf %9, %6 : vector<8x512xf32>
    %11 = arith.select %8, %6, %10 : vector<8x512xi1>, vector<8x512xf32>
    %c0_7 = arith.constant 0 : index
    %c0_8 = arith.constant 0 : index
    %12 = vector.load %arg4[%c0_7, %c0_8] : memref<512x512xbf16, #tpu.memory_space<vmem>>, vector<512x512xbf16>
    %c0_9 = arith.constant 0 : index
    %c0_10 = arith.constant 0 : index
    %13 = vector.load %arg5[%c0_9, %c0_10] : memref<1x512xf32, #tpu.memory_space<vmem>>, vector<1x512xf32>
    %14 = arith.truncf %11 : vector<8x512xf32> to vector<8x512xbf16>
    %cst_11 = arith.constant dense<0.000000e+00> : vector<8x512xf32>
    %15 = tpu.matmul %14, %12, %cst_11 {dimension_numbers = #tpu.dot_dimension_numbers<[1], [0], [0], [1], [0, 0, 1, 1], [], []>} : vector<8x512xbf16>, vector<512x512xbf16>, vector<8x512xf32> -> vector<8x512xf32>
    %16 = vector.broadcast %13 : vector<1x512xf32> to vector<8x512xf32>
    %17 = arith.addf %15, %16 : vector<8x512xf32>
    %cst_12 = arith.constant 0.000000e+00 : f32
    %18 = vector.broadcast %cst_12 : f32 to vector<8x512xf32>
    %19 = arith.cmpf ogt, %17, %18 : vector<8x512xf32>
    %cst_13 = arith.constant 5.000000e-02 : f32
    %20 = vector.broadcast %cst_13 : f32 to vector<8x512xf32>
    %21 = arith.mulf %20, %17 : vector<8x512xf32>
    %22 = arith.select %19, %17, %21 : vector<8x512xi1>, vector<8x512xf32>
    %c0_14 = arith.constant 0 : index
    %c0_15 = arith.constant 0 : index
    %23 = vector.load %arg6[%c0_14, %c0_15] : memref<512x16xbf16, #tpu.memory_space<vmem>>, vector<512x16xbf16>
    %c0_16 = arith.constant 0 : index
    %c0_17 = arith.constant 0 : index
    %24 = vector.load %arg7[%c0_16, %c0_17] : memref<1x16xf32, #tpu.memory_space<vmem>>, vector<1x16xf32>
    %25 = arith.truncf %22 : vector<8x512xf32> to vector<8x512xbf16>
    %cst_18 = arith.constant dense<0.000000e+00> : vector<8x16xf32>
    %26 = tpu.matmul %25, %23, %cst_18 {dimension_numbers = #tpu.dot_dimension_numbers<[1], [0], [0], [1], [0, 0, 1, 1], [], []>} : vector<8x512xbf16>, vector<512x16xbf16>, vector<8x16xf32> -> vector<8x16xf32>
    %27 = vector.broadcast %24 : vector<1x16xf32> to vector<8x16xf32>
    %28 = arith.addf %26, %27 : vector<8x16xf32>
    %c0_19 = arith.constant 0 : index
    %c0_20 = arith.constant 0 : index
    %29 = vector.load %arg8[%c0_19, %c0_20] : memref<8x16xf32, #tpu.memory_space<vmem>>, vector<8x16xf32>
    tpu.vector_store %arg8[%c0_19, %c0_20], %28 {strides = array<i32>} : memref<8x16xf32, #tpu.memory_space<vmem>>, vector<8x16xf32>,
    return
  }
  func.func @transform_0(%arg0: i32) -> (i32, i32) {
    %c0_i32 = arith.constant 0 : i32
    %c0_i32_0 = arith.constant 0 : i32
    return %arg0, %c0_i32 : i32, i32
  }
  func.func @transform_1(%arg0: i32) -> (i32, i32) {
    %c0_i32 = arith.constant 0 : i32
    %c0_i32_0 = arith.constant 0 : i32
    %c0_i32_1 = arith.constant 0 : i32
    return %c0_i32, %c0_i32_0 : i32, i32
  }
  func.func @transform_2(%arg0: i32) -> (i32, i32) {
    %c0_i32 = arith.constant 0 : i32
    %c0_i32_0 = arith.constant 0 : i32
    %c0_i32_1 = arith.constant 0 : i32
    return %c0_i32, %c0_i32_0 : i32, i32
  }
  func.func @transform_3(%arg0: i32) -> (i32, i32) {
    %c0_i32 = arith.constant 0 : i32
    %c0_i32_0 = arith.constant 0 : i32
    %c0_i32_1 = arith.constant 0 : i32
    return %c0_i32, %c0_i32_0 : i32, i32
  }
  func.func @transform_4(%arg0: i32) -> (i32, i32) {
    %c0_i32 = arith.constant 0 : i32
    %c0_i32_0 = arith.constant 0 : i32
    %c0_i32_1 = arith.constant 0 : i32
    return %c0_i32, %c0_i32_0 : i32, i32
  }
  func.func @transform_5(%arg0: i32) -> (i32, i32) {
    %c0_i32 = arith.constant 0 : i32
    %c0_i32_0 = arith.constant 0 : i32
    %c0_i32_1 = arith.constant 0 : i32
    return %c0_i32, %c0_i32_0 : i32, i32
  }
  func.func @transform_6(%arg0: i32) -> (i32, i32) {
    %c0_i32 = arith.constant 0 : i32
    %c0_i32_0 = arith.constant 0 : i32
    %c0_i32_1 = arith.constant 0 : i32
    return %c0_i32, %c0_i32_0 : i32, i32
  }
  func.func @transform_7(%arg0: i32) -> (i32, i32) {
    %c0_i32 = arith.constant 0 : i32
    %c0_i32_0 = arith.constant 0 : i32
    return %arg0, %c0_i32 : i32, i32
  }
}

</mosaic_0001>

<llo_original>
// kernel: tpu_custom_call.1
$region0: #{tpu_custom_call.1}
  #allocation0 [shape = 'u32[]', space=smem, size = 0x4, offset = 0x4, fixed_abs, tag = 'smem constant byte address 0x4 - core index']
  #allocation1 [shape = 'u32[144,128]{1,0:T(1,128)}', space=vmem, size = 0x12000, scoped, tag = 'internal scratch']
  %s0 = inlined_call_operand.vmem [shape: f32[8,16], index: 0, kind: input, shape index: {}]
  %s1 = inlined_call_operand.vmem [shape: bf16[16,512], index: 1, kind: input, shape index: {}]
  %s2 = inlined_call_operand.vmem [shape: f32[1,512], index: 2, kind: input, shape index: {}]
  %s3 = inlined_call_operand.hbm [shape: bf16[512,512], index: 3, kind: input, shape index: {}]
  %s4 = inlined_call_operand.vmem [shape: f32[1,512], index: 4, kind: input, shape index: {}]
  %s5 = inlined_call_operand.vmem [shape: bf16[512,16], index: 5, kind: input, shape index: {}]
  %s6 = inlined_call_operand.vmem [shape: f32[1,16], index: 6, kind: input, shape index: {}]
  %s7 = inlined_call_operand.hbm [shape: f32[8,16], index: 7, kind: output, shape index: {}]
  %s8 = sld [smem:[#allocation0]]
  $region42: #{tpu_custom_call.1} parent=0
    _
  %s10 = ssub.s32 1, %s8
  %s11 = scalar_select 0, %s10, %s8
  $region1: #{tpu_custom_call.1} parent=0
    #allocation2 [shape = 'u8[524288]{0}', space=vmem, size = 0x80000, scoped, tag = 'input window, operand 3, single buffered']
    #allocation3 [shape = 's32[1]{0}', space=sflag, size = 0x4, scoped, tag = 'scoped memory for tpu_custom_call.1']
    #allocation4 [shape = 's32[1]{0}', space=sflag, size = 0x4, scoped, tag = 'scoped memory for tpu_custom_call.1']
    #allocation5 [shape = 'u8[4096]{0}', space=vmem, size = 0x1000, scoped, tag = 'output window, operand 0, single buffered']
    %12 = vsyncpa [#allocation3], 0
    %13 = vsyncpa [#allocation4], 0
    // Predicated region
    $region2: #{tpu_custom_call.1} parent=1 // pred_check
      _
    $region3: #{tpu_custom_call.1} parent=1 // pred_check_branch
      %15 = sbr.rel (0) target = $region5
    $region4: #{tpu_custom_call.1} parent=1 // pred_region
      _
    $region5: #{tpu_custom_call.1} parent=1 // pred_fallthru
      _
    // Predicated region
    $region6: #{tpu_custom_call.1} parent=1 // pred_check
      _
    $region7: #{tpu_custom_call.1} parent=1 // pred_check_branch
      %17 = sbr.rel (0) target = $region9
    $region8: #{tpu_custom_call.1} parent=1 // pred_region
      _
    $region9: #{tpu_custom_call.1} parent=1 // pred_fallthru
      _
    // Predicated region
    $region10: #{tpu_custom_call.1} parent=1 // pred_check
      _
    $region11: #{tpu_custom_call.1} parent=1 // pred_check_branch
      %19 = sbr.rel (0) target = $region13
    $region12: #{tpu_custom_call.1} parent=1 // pred_region
      _
    $region13: #{tpu_custom_call.1} parent=1 // pred_fallthru
      _
    // Predicated region
    $region14: #{tpu_custom_call.1} parent=1 // pred_check
      _
    $region15: #{tpu_custom_call.1} parent=1 // pred_check_branch
      %21 = sbr.rel (0) target = $region17
    $region16: #{tpu_custom_call.1} parent=1 // pred_region
      %s23 = ssub.s32 16384, 16384
      %24 = vsyncadd [#allocation3], %s23
      %s25 = sshll.u32 [#allocation2], 4
      %s26 = int_to_ptr.vmem [resolvable:$true] %s25
      %31 = dma.hbm_to_vmem [thread:$0]  %s3, 16384, %s26, [#allocation3], 256, 256, 16
    $region17: #{tpu_custom_call.1} parent=1 // pred_fallthru
      _
    // Predicated region
    $region18: #{tpu_custom_call.1} parent=1 // pred_check
      _
    $region19: #{tpu_custom_call.1} parent=1 // pred_check_branch
      %33 = sbr.rel (0) target = $region21
    $region20: #{tpu_custom_call.1} parent=1 // pred_region
      _
    $region21: #{tpu_custom_call.1} parent=1 // pred_fallthru
      _
    // Predicated region
    $region22: #{tpu_custom_call.1} parent=1 // pred_check
      _
    $region23: #{tpu_custom_call.1} parent=1 // pred_check_branch
      %35 = sbr.rel (0) target = $region25
    $region24: #{tpu_custom_call.1} parent=1 // pred_region
      _
    $region25: #{tpu_custom_call.1} parent=1 // pred_fallthru
      _
    // Predicated region
    $region26: #{tpu_custom_call.1} parent=1 // pred_check
      _
    $region27: #{tpu_custom_call.1} parent=1 // pred_check_branch
      %37 = sbr.rel (0) target = $region29
    $region28: #{tpu_custom_call.1} parent=1 // pred_region
      _
    $region29: #{tpu_custom_call.1} parent=1 // pred_fallthru
      _
    // Predicated region
    $region30: #{tpu_custom_call.1} parent=1 // pred_check
      _
    $region31: #{tpu_custom_call.1} parent=1 // pred_check_branch
      %39 = sbr.rel (0) target = $region33
    $region32: #{tpu_custom_call.1} parent=1 // pred_region
      %40 = dma.done [#allocation3], 16384
    $region33: #{tpu_custom_call.1} parent=1 // pred_fallthru
      _
    %v42 = vld [vmem:[%s0] sm:$0xff]
    %v43 = vld [vmem:[%s1] sm:$0xff]
    %v44 = vld [vmem:[%s1 + $0x8] sm:$0xff]
    %v45 = vld [vmem:[%s1 + $0x10] sm:$0xff]
    %v46 = vld [vmem:[%s1 + $0x18] sm:$0xff]
    %v47 = vld [vmem:[%s2] sm:$0xf]
    %v48 = vpack.c.bf16 %v42, %v42
    %v50 = vlaneseq
    %v51 = vshrl.u32 %v50, 7
    %v52 = vsub.s32 0, %v51
    %v53 = vrot.slane %v47, %v52
    %v54 = vlaneseq
    %v55 = vshrl.u32 %v54, 7
    %v56 = vsub.s32 1, %v55
    %v57 = vrot.slane %v47, %v56
    %v58 = vlaneseq
    %v59 = vshrl.u32 %v58, 7
    %v60 = vsub.s32 2, %v59
    %v61 = vrot.slane %v47, %v60
    %v62 = vlaneseq
    %v63 = vshrl.u32 %v62, 7
    %v64 = vsub.s32 3, %v63
    %v65 = vrot.slane %v47, %v64
    %v74 = vunpack.c.l.b16 %v43
    %v75 = vunpack.c.h.b16 %v43
    %v76 = vunpack.c.l.b16 %v44
    %v77 = vunpack.c.h.b16 %v44
    %v78 = vunpack.c.l.b16 %v45
    %v79 = vunpack.c.h.b16 %v45
    %v80 = vunpack.c.l.b16 %v46
    %v81 = vunpack.c.h.b16 %v46
    %v82 = vpack.c.b16 %v78, %v74
    %v83 = vpack.c.b16 %v79, %v75
    %v84 = vpack.c.b16 %v80, %v76
    %v85 = vpack.c.b16 %v81, %v77
    %vm90 = vcmask 130048
    %v92 = vsel %vm90, %v48, 0
    %94 = vmatprep.subr.bf16.mxu0 %v83
    %95 = vmatpush1.bf16.msra.mxu0 %v82
    %96 = vmatprep.subr.bf16.mxu0 0
    %97 = vmatpush1.bf16.msra.mxu0 0
    %98 = vmatprep.subr.bf16.mxu0 0
    %99 = vmatpush1.bf16.msra.mxu0 0
    %100 = vmatprep.subr.bf16.mxu0 0
    %101 = vmatpush1.bf16.msra.mxu0 0
    %102 = vmatprep.subr.bf16.mxu0 0
    %103 = vmatpush1.bf16.msra.mxu0 0
    %104 = vmatprep.subr.bf16.mxu0 0
    %105 = vmatpush1.bf16.msra.mxu0 0
    %106 = vmatprep.subr.bf16.mxu0 0
    %107 = vmatpush1.bf16.msra.mxu0 0
    %108 = vmatprep.subr.bf16.mxu0 0
    %109 = vmatpush1.bf16.msra.mxu0 0
    %110 = vmatprep.subr.bf16.mxu0 0
    %111 = vmatpush1.bf16.msra.mxu0 0
    %112 = vmatprep.subr.bf16.mxu0 0
    %113 = vmatpush1.bf16.msra.mxu0 0
    %114 = vmatprep.subr.bf16.mxu0 0
    %115 = vmatpush1.bf16.msra.mxu0 0
    %116 = vmatprep.subr.bf16.mxu0 0
    %117 = vmatpush1.bf16.msra.mxu0 0
    %118 = vmatprep.subr.bf16.mxu0 0
    %119 = vmatpush1.bf16.msra.mxu0 0
    %120 = vmatprep.subr.bf16.mxu0 0
    %121 = vmatpush1.bf16.msra.mxu0 0
    %122 = vmatprep.subr.bf16.mxu0 0
    %123 = vmatpush1.bf16.msra.mxu0 0
    %124 = vmatprep.subr.bf16.mxu0 0
    %125 = vmatpush1.bf16.msra.mxu0 0
    %126 = vmatprep.mubr.bf16.mxu0 0
    %127 = vmatmul.mubr.bf16.gmra.mrb[0].mxu0 %v92
    %v128 = vpop.f32.mrb[0].mxu0
    %v129 = vadd.f32 %v53, %v128
    %v130 = vpop.f32.mrb[0].mxu0
    %v131 = vadd.f32 %v57, %v130
    %v132 = vpop.f32.mrb[0].mxu0
    %v133 = vpop.f32.mrb[0].mxu0
    %134 = vdwg.mxu0
    %135 = vmatprep.subr.bf16.mxu0 %v85
    %136 = vmatpush1.bf16.msra.mxu0 %v84
    %137 = vmatprep.subr.bf16.mxu0 0
    %138 = vmatpush1.bf16.msra.mxu0 0
    %139 = vmatprep.subr.bf16.mxu0 0
    %140 = vmatpush1.bf16.msra.mxu0 0
    %141 = vmatprep.subr.bf16.mxu0 0
    %142 = vmatpush1.bf16.msra.mxu0 0
    %143 = vmatprep.subr.bf16.mxu0 0
    %144 = vmatpush1.bf16.msra.mxu0 0
    %145 = vmatprep.subr.bf16.mxu0 0
    %146 = vmatpush1.bf16.msra.mxu0 0
    %147 = vmatprep.subr.bf16.mxu0 0
    %148 = vmatpush1.bf16.msra.mxu0 0
    %149 = vmatprep.subr.bf16.mxu0 0
    %150 = vmatpush1.bf16.msra.mxu0 0
    %151 = vmatprep.subr.bf16.mxu0 0
    %152 = vmatpush1.bf16.msra.mxu0 0
    %153 = vmatprep.subr.bf16.mxu0 0
    %154 = vmatpush1.bf16.msra.mxu0 0
    %155 = vmatprep.subr.bf16.mxu0 0
    %156 = vmatpush1.bf16.msra.mxu0 0
    %157 = vmatprep.subr.bf16.mxu0 0
    %158 = vmatpush1.bf16.msra.mxu0 0
    %159 = vmatprep.subr.bf16.mxu0 0
    %160 = vmatpush1.bf16.msra.mxu0 0
    %161 = vmatprep.subr.bf16.mxu0 0
    %162 = vmatpush1.bf16.msra.mxu0 0
    %163 = vmatprep.subr.bf16.mxu0 0
    %164 = vmatpush1.bf16.msra.mxu0 0
    %165 = vmatprep.subr.bf16.mxu0 0
    %166 = vmatpush1.bf16.msra.mxu0 0
    %167 = vmatprep.mubr.bf16.mxu0 0
    %168 = vmatmul.mubr.bf16.gmra.mrb[0].mxu0 %v92
    %v169 = vpop.f32.mrb[0].mxu0
    %v170 = vadd.f32 %v61, %v169
    %v171 = vpop.f32.mrb[0].mxu0
    %v172 = vadd.f32 %v65, %v171
    %v173 = vpop.f32.mrb[0].mxu0
    %v174 = vpop.f32.mrb[0].mxu0
    %175 = vdwg.mxu0
    %vm176 = vcmp.gt.f32.partialorder %v129, 0.0
    %vm177 = vcmp.gt.f32.partialorder %v131, 0.0
    %vm178 = vcmp.gt.f32.partialorder %v170, 0.0
    %vm179 = vcmp.gt.f32.partialorder %v172, 0.0
    %v180 = vmul.f32 %v129, 0.05
    %v181 = vmul.f32 %v131, 0.05
    %v182 = vmul.f32 %v170, 0.05
    %v183 = vmul.f32 %v172, 0.05
    %v184 = vsel %vm176, %v129, %v180
    %v185 = vsel %vm177, %v131, %v181
    %v186 = vsel %vm178, %v170, %v182
    %v187 = vsel %vm179, %v172, %v183
    %v188 = vld [vmem:[#allocation2] sm:$0xff]
    %v189 = vld [vmem:[#allocation2 + $0x8] sm:$0xff]
    %v190 = vld [vmem:[#allocation2 + $0x10] sm:$0xff]
    %v191 = vld [vmem:[#allocation2 + $0x18] sm:$0xff]
    %v192 = vld [vmem:[#allocation2 + $0x20] sm:$0xff]
    %v193 = vld [vmem:[#allocation2 + $0x28] sm:$0xff]
    %v194 = vld [vmem:[#allocation2 + $0x30] sm:$0xff]
    %v195 = vld [vmem:[#allocation2 + $0x38] sm:$0xff]
    %v196 = vld [vmem:[#allocation2 + $0x40] sm:$0xff]
    %v197 = vld [vmem:[#allocation2 + $0x48] sm:$0xff]
    %v198 = vld [vmem:[#allocation2 + $0x50] sm:$0xff]
    %v199 = vld [vmem:[#allocation2 + $0x58] sm:$0xff]
    %v200 = vld [vmem:[#allocation2 + $0x60] sm:$0xff]
    %v201 = vld [vmem:[#allocation2 + $0x68] sm:$0xff]
    %v202 = vld [vmem:[#allocation2 + $0x70] sm:$0xff]
    %v203 = vld [vmem:[#allocation2 + $0x78] sm:$0xff]
    %v204 = vld [vmem:[#allocation2 + $0x80] sm:$0xff]
    %v205 = vld [vmem:[#allocation2 + $0x88] sm:$0xff]
    %v206 = vld [vmem:[#allocation2 + $0x90] sm:$0xff]
    %v207 = vld [vmem:[#allocation2 + $0x98] sm:$0xff]
    %v208 = vld [vmem:[#allocation2 + $0xa0] sm:$0xff]
    %v209 = vld [vmem:[#allocation2 + $0xa8] sm:$0xff]
    %v210 = vld [vmem:[#allocation2 + $0xb0] sm:$0xff]
    %v211 = vld [vmem:[#allocation2 + $0xb8] sm:$0xff]
    %v212 = vld [vmem:[#allocation2 + $0xc0] sm:$0xff]
    %v213 = vld [vmem:[#allocation2 + $0xc8] sm:$0xff]
    %v214 = vld [vmem:[#allocation2 + $0xd0] sm:$0xff]
    %v215 = vld [vmem:[#allocation2 + $0xd8] sm:$0xff]
    %v216 = vld [vmem:[#allocation2 + $0xe0] sm:$0xff]
    %v217 = vld [vmem:[#allocation2 + $0xe8] sm:$0xff]
    %v218 = vld [vmem:[#allocation2 + $0xf0] sm:$0xff]
    %v219 = vld [vmem:[#allocation2 + $0xf8] sm:$0xff]
    %v220 = vld [vmem:[#allocation2 + $0x100] sm:$0xff]
    %v221 = vld [vmem:[#allocation2 + $0x108] sm:$0xff]
    %v222 = vld [vmem:[#allocation2 + $0x110] sm:$0xff]
    %v223 = vld [vmem:[#allocation2 + $0x118] sm:$0xff]
    %v224 = vld [vmem:[#allocation2 + $0x120] sm:$0xff]
    %v225 = vld [vmem:[#allocation2 + $0x128] sm:$0xff]
    %v226 = vld [vmem:[#allocation2 + $0x130] sm:$0xff]
    %v227 = vld [vmem:[#allocation2 + $0x138] sm:$0xff]
    %v228 = vld [vmem:[#allocation2 + $0x140] sm:$0xff]
    %v229 = vld [vmem:[#allocation2 + $0x148] sm:$0xff]
    %v230 = vld [vmem:[#allocation2 + $0x150] sm:$0xff]
    %v231 = vld [vmem:[#allocation2 + $0x158] sm:$0xff]
    %v232 = vld [vmem:[#allocation2 + $0x160] sm:$0xff]
    %v233 = vld [vmem:[#allocation2 + $0x168] sm:$0xff]
    %v234 = vld [vmem:[#allocation2 + $0x170] sm:$0xff]
    %v235 = vld [vmem:[#allocation2 + $0x178] sm:$0xff]
    %v236 = vld [vmem:[#allocation2 + $0x180] sm:$0xff]
    %v237 = vld [vmem:[#allocation2 + $0x188] sm:$0xff]
    %v238 = vld [vmem:[#allocation2 + $0x190] sm:$0xff]
    %v239 = vld [vmem:[#allocation2 + $0x198] sm:$0xff]
    %v240 = vld [vmem:[#allocation2 + $0x1a0] sm:$0xff]
    %v241 = vld [vmem:[#allocation2 + $0x1a8] sm:$0xff]
    %v242 = vld [vmem:[#allocation2 + $0x1b0] sm:$0xff]
    %v243 = vld [vmem:[#allocation2 + $0x1b8] sm:$0xff]
    %v244 = vld [vmem:[#allocation2 + $0x1c0] sm:$0xff]
    %v245 = vld [vmem:[#allocation2 + $0x1c8] sm:$0xff]
    %v246 = vld [vmem:[#allocation2 + $0x1d0] sm:$0xff]
    %v247 = vld [vmem:[#allocation2 + $0x1d8] sm:$0xff]
    %v248 = vld [vmem:[#allocation2 + $0x1e0] sm:$0xff]
    %v249 = vld [vmem:[#allocation2 + $0x1e8] sm:$0xff]
    %v250 = vld [vmem:[#allocation2 + $0x1f0] sm:$0xff]
    %v251 = vld [vmem:[#allocation2 + $0x1f8] sm:$0xff]
    %v252 = vld [vmem:[#allocation2 + $0x200] sm:$0xff]
    %v253 = vld [vmem:[#allocation2 + $0x208] sm:$0xff]
    %v254 = vld [vmem:[#allocation2 + $0x210] sm:$0xff]
    %v255 = vld [vmem:[#allocation2 + $0x218] sm:$0xff]
    %v256 = vld [vmem:[#allocation2 + $0x220] sm:$0xff]
    %v257 = vld [vmem:[#allocation2 + $0x228] sm:$0xff]
    %v258 = vld [vmem:[#allocation2 + $0x230] sm:$0xff]
    %v259 = vld [vmem:[#allocation2 + $0x238] sm:$0xff]
    %v260 = vld [vmem:[#allocation2 + $0x240] sm:$0xff]
    %v261 = vld [vmem:[#allocation2 + $0x248] sm:$0xff]
    %v262 = vld [vmem:[#allocation2 + $0x250] sm:$0xff]
    %v263 = vld [vmem:[#allocation2 + $0x258] sm:$0xff]
    %v264 = vld [vmem:[#allocation2 + $0x260] sm:$0xff]
    %v265 = vld [vmem:[#allocation2 + $0x268] sm:$0xff]
    %v266 = vld [vmem:[#allocation2 + $0x270] sm:$0xff]
    %v267 = vld [vmem:[#allocation2 + $0x278] sm:$0xff]
    %v268 = vld [vmem:[#allocation2 + $0x280] sm:$0xff]
    %v269 = vld [vmem:[#allocation2 + $0x288] sm:$0xff]
    %v270 = vld [vmem:[#allocation2 + $0x290] sm:$0xff]
    %v271 = vld [vmem:[#allocation2 + $0x298] sm:$0xff]
    %v272 = vld [vmem:[#allocation2 + $0x2a0] sm:$0xff]
    %v273 = vld [vmem:[#allocation2 + $0x2a8] sm:$0xff]
    %v274 = vld [vmem:[#allocation2 + $0x2b0] sm:$0xff]
    %v275 = vld [vmem:[#allocation2 + $0x2b8] sm:$0xff]
    %v276 = vld [vmem:[#allocation2 + $0x2c0] sm:$0xff]
    %v277 = vld [vmem:[#allocation2 + $0x2c8] sm:$0xff]
    %v278 = vld [vmem:[#allocation2 + $0x2d0] sm:$0xff]
    %v279 = vld [vmem:[#allocation2 + $0x2d8] sm:$0xff]
    %v280 = vld [vmem:[#allocation2 + $0x2e0] sm:$0xff]
    %v281 = vld [vmem:[#allocation2 + $0x2e8] sm:$0xff]
    %v282 = vld [vmem:[#allocation2 + $0x2f0] sm:$0xff]
    %v283 = vld [vmem:[#allocation2 + $0x2f8] sm:$0xff]
    %v284 = vld [vmem:[#allocation2 + $0x300] sm:$0xff]
    %v285 = vld [vmem:[#allocation2 + $0x308] sm:$0xff]
    %v286 = vld [vmem:[#allocation2 + $0x310] sm:$0xff]
    %v287 = vld [vmem:[#allocation2 + $0x318] sm:$0xff]
    %v288 = vld [vmem:[#allocation2 + $0x320] sm:$0xff]
    %v289 = vld [vmem:[#allocation2 + $0x328] sm:$0xff]
    %v290 = vld [vmem:[#allocation2 + $0x330] sm:$0xff]
    %v291 = vld [vmem:[#allocation2 + $0x338] sm:$0xff]
    %v292 = vld [vmem:[#allocation2 + $0x340] sm:$0xff]
    %v293 = vld [vmem:[#allocation2 + $0x348] sm:$0xff]
    %v294 = vld [vmem:[#allocation2 + $0x350] sm:$0xff]
    %v295 = vld [vmem:[#allocation2 + $0x358] sm:$0xff]
    %v296 = vld [vmem:[#allocation2 + $0x360] sm:$0xff]
    %v297 = vld [vmem:[#allocation2 + $0x368] sm:$0xff]
    %v298 = vld [vmem:[#allocation2 + $0x370] sm:$0xff]
    %v299 = vld [vmem:[#allocation2 + $0x378] sm:$0xff]
    %v300 = vld [vmem:[#allocation2 + $0x380] sm:$0xff]
    %v301 = vld [vmem:[#allocation2 + $0x388] sm:$0xff]
    %v302 = vld [vmem:[#allocation2 + $0x390] sm:$0xff]
    %v303 = vld [vmem:[#allocation2 + $0x398] sm:$0xff]
    %v304 = vld [vmem:[#allocation2 + $0x3a0] sm:$0xff]
    %v305 = vld [vmem:[#allocation2 + $0x3a8] sm:$0xff]
    %v306 = vld [vmem:[#allocation2 + $0x3b0] sm:$0xff]
    %v307 = vld [vmem:[#allocation2 + $0x3b8] sm:$0xff]
    %v308 = vld [vmem:[#allocation2 + $0x3c0] sm:$0xff]
    %v309 = vld [vmem:[#allocation2 + $0x3c8] sm:$0xff]
    %v310 = vld [vmem:[#allocation2 + $0x3d0] sm:$0xff]
    %v311 = vld [vmem:[#allocation2 + $0x3d8] sm:$0xff]
    %v312 = vld [vmem:[#allocation2 + $0x3e0] sm:$0xff]
    %v313 = vld [vmem:[#allocation2 + $0x3e8] sm:$0xff]
    %v314 = vld [vmem:[#allocation2 + $0x3f0] sm:$0xff]
    %v315 = vld [vmem:[#allocation2 + $0x3f8] sm:$0xff]
    %v316 = vld [vmem:[%s4] sm:$0xf]
    %v317 = vpack.c.bf16 %v184, %v184
    %v318 = vpack.c.bf16 %v185, %v185
    %v319 = vpack.c.bf16 %v186, %v186
    %v320 = vpack.c.bf16 %v187, %v187
    %v322 = vlaneseq
    %v323 = vshrl.u32 %v322, 7
    %v324 = vsub.s32 0, %v323
    %v325 = vrot.slane %v316, %v324
    %v326 = vlaneseq
    %v327 = vshrl.u32 %v326, 7
    %v328 = vsub.s32 1, %v327
    %v329 = vrot.slane %v316, %v328
    %v330 = vlaneseq
    %v331 = vshrl.u32 %v330, 7
    %v332 = vsub.s32 2, %v331
    %v333 = vrot.slane %v316, %v332
    %v334 = vlaneseq
    %v335 = vshrl.u32 %v334, 7
    %v336 = vsub.s32 3, %v335
    %v337 = vrot.slane %v316, %v336
    %v470 = vunpack.c.l.b16 %v188
    %v471 = vunpack.c.h.b16 %v188
    %v472 = vunpack.c.l.b16 %v189
    %v473 = vunpack.c.h.b16 %v189
    %v474 = vunpack.c.l.b16 %v190
    %v475 = vunpack.c.h.b16 %v190
    %v476 = vunpack.c.l.b16 %v191
    %v477 = vunpack.c.h.b16 %v191
    %v478 = vunpack.c.l.b16 %v192
    %v479 = vunpack.c.h.b16 %v192
    %v480 = vunpack.c.l.b16 %v193
    %v481 = vunpack.c.h.b16 %v193
    %v482 = vunpack.c.l.b16 %v194
    %v483 = vunpack.c.h.b16 %v194
    %v484 = vunpack.c.l.b16 %v195
    %v485 = vunpack.c.h.b16 %v195
    %v486 = vunpack.c.l.b16 %v196
    %v487 = vunpack.c.h.b16 %v196
    %v488 = vunpack.c.l.b16 %v197
    %v489 = vunpack.c.h.b16 %v197
    %v490 = vunpack.c.l.b16 %v198
    %v491 = vunpack.c.h.b16 %v198
    %v492 = vunpack.c.l.b16 %v199
    %v493 = vunpack.c.h.b16 %v199
    %v494 = vunpack.c.l.b16 %v200
    %v495 = vunpack.c.h.b16 %v200
    %v496 = vunpack.c.l.b16 %v201
    %v497 = vunpack.c.h.b16 %v201
    %v498 = vunpack.c.l.b16 %v202
    %v499 = vunpack.c.h.b16 %v202
    %v500 = vunpack.c.l.b16 %v203
    %v501 = vunpack.c.h.b16 %v203
    %v502 = vunpack.c.l.b16 %v204
    %v503 = vunpack.c.h.b16 %v204
    %v504 = vunpack.c.l.b16 %v205
    %v505 = vunpack.c.h.b16 %v205
    %v506 = vunpack.c.l.b16 %v206
    %v507 = vunpack.c.h.b16 %v206
    %v508 = vunpack.c.l.b16 %v207
    %v509 = vunpack.c.h.b16 %v207
    %v510 = vunpack.c.l.b16 %v208
    %v511 = vunpack.c.h.b16 %v208
    %v512 = vunpack.c.l.b16 %v209
    %v513 = vunpack.c.h.b16 %v209
    %v514 = vunpack.c.l.b16 %v210
    %v515 = vunpack.c.h.b16 %v210
    %v516 = vunpack.c.l.b16 %v211
    %v517 = vunpack.c.h.b16 %v211
    %v518 = vunpack.c.l.b16 %v212
    %v519 = vunpack.c.h.b16 %v212
    %v520 = vunpack.c.l.b16 %v213
    %v521 = vunpack.c.h.b16 %v213
    %v522 = vunpack.c.l.b16 %v214
    %v523 = vunpack.c.h.b16 %v214
    %v524 = vunpack.c.l.b16 %v215
    %v525 = vunpack.c.h.b16 %v215
    %v526 = vunpack.c.l.b16 %v216
    %v527 = vunpack.c.h.b16 %v216
    %v528 = vunpack.c.l.b16 %v217
    %v529 = vunpack.c.h.b16 %v217
    %v530 = vunpack.c.l.b16 %v218
    %v531 = vunpack.c.h.b16 %v218
    %v532 = vunpack.c.l.b16 %v219
    %v533 = vunpack.c.h.b16 %v219
    %v534 = vunpack.c.l.b16 %v220
    %v535 = vunpack.c.h.b16 %v220
    %v536 = vunpack.c.l.b16 %v221
    %v537 = vunpack.c.h.b16 %v221
    %v538 = vunpack.c.l.b16 %v222
    %v539 = vunpack.c.h.b16 %v222
    %v540 = vunpack.c.l.b16 %v223
    %v541 = vunpack.c.h.b16 %v223
    %v542 = vunpack.c.l.b16 %v224
    %v543 = vunpack.c.h.b16 %v224
    %v544 = vunpack.c.l.b16 %v225
    %v545 = vunpack.c.h.b16 %v225
    %v546 = vunpack.c.l.b16 %v226
    %v547 = vunpack.c.h.b16 %v226
    %v548 = vunpack.c.l.b16 %v227
    %v549 = vunpack.c.h.b16 %v227
    %v550 = vunpack.c.l.b16 %v228
    %v551 = vunpack.c.h.b16 %v228
    %v552 = vunpack.c.l.b16 %v229
    %v553 = vunpack.c.h.b16 %v229
    %v554 = vunpack.c.l.b16 %v230
    %v555 = vunpack.c.h.b16 %v230
    %v556 = vunpack.c.l.b16 %v231
    %v557 = vunpack.c.h.b16 %v231
    %v558 = vunpack.c.l.b16 %v232
    %v559 = vunpack.c.h.b16 %v232
    %v560 = vunpack.c.l.b16 %v233
    %v561 = vunpack.c.h.b16 %v233
    %v562 = vunpack.c.l.b16 %v234
    %v563 = vunpack.c.h.b16 %v234
    %v564 = vunpack.c.l.b16 %v235
    %v565 = vunpack.c.h.b16 %v235
    %v566 = vunpack.c.l.b16 %v236
    %v567 = vunpack.c.h.b16 %v236
    %v568 = vunpack.c.l.b16 %v237
    %v569 = vunpack.c.h.b16 %v237
    %v570 = vunpack.c.l.b16 %v238
    %v571 = vunpack.c.h.b16 %v238
    %v572 = vunpack.c.l.b16 %v239
    %v573 = vunpack.c.h.b16 %v239
    %v574 = vunpack.c.l.b16 %v240
    %v575 = vunpack.c.h.b16 %v240
    %v576 = vunpack.c.l.b16 %v241
    %v577 = vunpack.c.h.b16 %v241
    %v578 = vunpack.c.l.b16 %v242
    %v579 = vunpack.c.h.b16 %v242
    %v580 = vunpack.c.l.b16 %v243
    %v581 = vunpack.c.h.b16 %v243
    %v582 = vunpack.c.l.b16 %v244
    %v583 = vunpack.c.h.b16 %v244
    %v584 = vunpack.c.l.b16 %v245
    %v585 = vunpack.c.h.b16 %v245
    %v586 = vunpack.c.l.b16 %v246
    %v587 = vunpack.c.h.b16 %v246
    %v588 = vunpack.c.l.b16 %v247
    %v589 = vunpack.c.h.b16 %v247
    %v590 = vunpack.c.l.b16 %v248
    %v591 = vunpack.c.h.b16 %v248
    %v592 = vunpack.c.l.b16 %v249
    %v593 = vunpack.c.h.b16 %v249
    %v594 = vunpack.c.l.b16 %v250
    %v595 = vunpack.c.h.b16 %v250
    %v596 = vunpack.c.l.b16 %v251
    %v597 = vunpack.c.h.b16 %v251
    %v598 = vunpack.c.l.b16 %v252
    %v599 = vunpack.c.h.b16 %v252
    %v600 = vunpack.c.l.b16 %v253
    %v601 = vunpack.c.h.b16 %v253
    %v602 = vunpack.c.l.b16 %v254
    %v603 = vunpack.c.h.b16 %v254
    %v604 = vunpack.c.l.b16 %v255
    %v605 = vunpack.c.h.b16 %v255
    %v606 = vunpack.c.l.b16 %v256
    %v607 = vunpack.c.h.b16 %v256
    %v608 = vunpack.c.l.b16 %v257
    %v609 = vunpack.c.h.b16 %v257
    %v610 = vunpack.c.l.b16 %v258
    %v611 = vunpack.c.h.b16 %v258
    %v612 = vunpack.c.l.b16 %v259
    %v613 = vunpack.c.h.b16 %v259
    %v614 = vunpack.c.l.b16 %v260
    %v615 = vunpack.c.h.b16 %v260
    %v616 = vunpack.c.l.b16 %v261
    %v617 = vunpack.c.h.b16 %v261
    %v618 = vunpack.c.l.b16 %v262
    %v619 = vunpack.c.h.b16 %v262
    %v620 = vunpack.c.l.b16 %v263
    %v621 = vunpack.c.h.b16 %v263
    %v622 = vunpack.c.l.b16 %v264
    %v623 = vunpack.c.h.b16 %v264
    %v624 = vunpack.c.l.b16 %v265
    %v625 = vunpack.c.h.b16 %v265
    %v626 = vunpack.c.l.b16 %v266
    %v627 = vunpack.c.h.b16 %v266
    %v628 = vunpack.c.l.b16 %v267
    %v629 = vunpack.c.h.b16 %v267
    %v630 = vunpack.c.l.b16 %v268
    %v631 = vunpack.c.h.b16 %v268
    %v632 = vunpack.c.l.b16 %v269
    %v633 = vunpack.c.h.b16 %v269
    %v634 = vunpack.c.l.b16 %v270
    %v635 = vunpack.c.h.b16 %v270
    %v636 = vunpack.c.l.b16 %v271
    %v637 = vunpack.c.h.b16 %v271
    %v638 = vunpack.c.l.b16 %v272
    %v639 = vunpack.c.h.b16 %v272
    %v640 = vunpack.c.l.b16 %v273
    %v641 = vunpack.c.h.b16 %v273
    %v642 = vunpack.c.l.b16 %v274
    %v643 = vunpack.c.h.b16 %v274
    %v644 = vunpack.c.l.b16 %v275
    %v645 = vunpack.c.h.b16 %v275
    %v646 = vunpack.c.l.b16 %v276
    %v647 = vunpack.c.h.b16 %v276
    %v648 = vunpack.c.l.b16 %v277
    %v649 = vunpack.c.h.b16 %v277
    %v650 = vunpack.c.l.b16 %v278
    %v651 = vunpack.c.h.b16 %v278
    %v652 = vunpack.c.l.b16 %v279
    %v653 = vunpack.c.h.b16 %v279
    %v654 = vunpack.c.l.b16 %v280
    %v655 = vunpack.c.h.b16 %v280
    %v656 = vunpack.c.l.b16 %v281
    %v657 = vunpack.c.h.b16 %v281
    %v658 = vunpack.c.l.b16 %v282
    %v659 = vunpack.c.h.b16 %v282
    %v660 = vunpack.c.l.b16 %v283
    %v661 = vunpack.c.h.b16 %v283
    %v662 = vunpack.c.l.b16 %v284
    %v663 = vunpack.c.h.b16 %v284
    %v664 = vunpack.c.l.b16 %v285
    %v665 = vunpack.c.h.b16 %v285
    %v666 = vunpack.c.l.b16 %v286
    %v667 = vunpack.c.h.b16 %v286
    %v668 = vunpack.c.l.b16 %v287
    %v669 = vunpack.c.h.b16 %v287
    %v670 = vunpack.c.l.b16 %v288
    %v671 = vunpack.c.h.b16 %v288
    %v672 = vunpack.c.l.b16 %v289
    %v673 = vunpack.c.h.b16 %v289
    %v674 = vunpack.c.l.b16 %v290
    %v675 = vunpack.c.h.b16 %v290
    %v676 = vunpack.c.l.b16 %v291
    %v677 = vunpack.c.h.b16 %v291
    %v678 = vunpack.c.l.b16 %v292
    %v679 = vunpack.c.h.b16 %v292
    %v680 = vunpack.c.l.b16 %v293
    %v681 = vunpack.c.h.b16 %v293
    %v682 = vunpack.c.l.b16 %v294
    %v683 = vunpack.c.h.b16 %v294
    %v684 = vunpack.c.l.b16 %v295
    %v685 = vunpack.c.h.b16 %v295
    %v686 = vunpack.c.l.b16 %v296
    %v687 = vunpack.c.h.b16 %v296
    %v688 = vunpack.c.l.b16 %v297
    %v689 = vunpack.c.h.b16 %v297
    %v690 = vunpack.c.l.b16 %v298
    %v691 = vunpack.c.h.b16 %v298
    %v692 = vunpack.c.l.b16 %v299
    %v693 = vunpack.c.h.b16 %v299
    %v694 = vunpack.c.l.b16 %v300
    %v695 = vunpack.c.h.b16 %v300
    %v696 = vunpack.c.l.b16 %v301
    %v697 = vunpack.c.h.b16 %v301
    %v698 = vunpack.c.l.b16 %v302
    %v699 = vunpack.c.h.b16 %v302
    %v700 = vunpack.c.l.b16 %v303
    %v701 = vunpack.c.h.b16 %v303
    %v702 = vunpack.c.l.b16 %v304
    %v703 = vunpack.c.h.b16 %v304
    %v704 = vunpack.c.l.b16 %v305
    %v705 = vunpack.c.h.b16 %v305
    %v706 = vunpack.c.l.b16 %v306
    %v707 = vunpack.c.h.b16 %v306
    %v708 = vunpack.c.l.b16 %v307
    %v709 = vunpack.c.h.b16 %v307
    %v710 = vunpack.c.l.b16 %v308
    %v711 = vunpack.c.h.b16 %v308
    %v712 = vunpack.c.l.b16 %v309
    %v713 = vunpack.c.h.b16 %v309
    %v714 = vunpack.c.l.b16 %v310
    %v715 = vunpack.c.h.b16 %v310
    %v716 = vunpack.c.l.b16 %v311
    %v717 = vunpack.c.h.b16 %v311
    %v718 = vunpack.c.l.b16 %v312
    %v719 = vunpack.c.h.b16 %v312
    %v720 = vunpack.c.l.b16 %v313
    %v721 = vunpack.c.h.b16 %v313
    %v722 = vunpack.c.l.b16 %v314
    %v723 = vunpack.c.h.b16 %v314
    %v724 = vunpack.c.l.b16 %v315
    %v725 = vunpack.c.h.b16 %v315
    %v726 = vpack.c.b16 %v474, %v470
    %v727 = vpack.c.b16 %v475, %v471
    %v728 = vpack.c.b16 %v476, %v472
    %v729 = vpack.c.b16 %v477, %v473
    %v730 = vpack.c.b16 %v482, %v478
    %v731 = vpack.c.b16 %v483, %v479
    %v732 = vpack.c.b16 %v484, %v480
    %v733 = vpack.c.b16 %v485, %v481
    %v734 = vpack.c.b16 %v490, %v486
    %v735 = vpack.c.b16 %v491, %v487
    %v736 = vpack.c.b16 %v492, %v488
    %v737 = vpack.c.b16 %v493, %v489
    %v738 = vpack.c.b16 %v498, %v494
    %v739 = vpack.c.b16 %v499, %v495
    %v740 = vpack.c.b16 %v500, %v496
    %v741 = vpack.c.b16 %v501, %v497
    %v742 = vpack.c.b16 %v506, %v502
    %v743 = vpack.c.b16 %v507, %v503
    %v744 = vpack.c.b16 %v508, %v504
    %v745 = vpack.c.b16 %v509, %v505
    %v746 = vpack.c.b16 %v514, %v510
    %v747 = vpack.c.b16 %v515, %v511
    %v748 = vpack.c.b16 %v516, %v512
    %v749 = vpack.c.b16 %v517, %v513
    %v750 = vpack.c.b16 %v522, %v518
    %v751 = vpack.c.b16 %v523, %v519
    %v752 = vpack.c.b16 %v524, %v520
    %v753 = vpack.c.b16 %v525, %v521
    %v754 = vpack.c.b16 %v530, %v526
    %v755 = vpack.c.b16 %v531, %v527
    %v756 = vpack.c.b16 %v532, %v528
    %v757 = vpack.c.b16 %v533, %v529
    %v758 = vpack.c.b16 %v538, %v534
    %v759 = vpack.c.b16 %v539, %v535
    %v760 = vpack.c.b16 %v540, %v536
    %v761 = vpack.c.b16 %v541, %v537
    %v762 = vpack.c.b16 %v546, %v542
    %v763 = vpack.c.b16 %v547, %v543
    %v764 = vpack.c.b16 %v548, %v544
    %v765 = vpack.c.b16 %v549, %v545
    %v766 = vpack.c.b16 %v554, %v550
    %v767 = vpack.c.b16 %v555, %v551
    %v768 = vpack.c.b16 %v556, %v552
    %v769 = vpack.c.b16 %v557, %v553
    %v770 = vpack.c.b16 %v562, %v558
    %v771 = vpack.c.b16 %v563, %v559
    %v772 = vpack.c.b16 %v564, %v560
    %v773 = vpack.c.b16 %v565, %v561
    %v774 = vpack.c.b16 %v570, %v566
    %v775 = vpack.c.b16 %v571, %v567
    %v776 = vpack.c.b16 %v572, %v568
    %v777 = vpack.c.b16 %v573, %v569
    %v778 = vpack.c.b16 %v578, %v574
    %v779 = vpack.c.b16 %v579, %v575
    %v780 = vpack.c.b16 %v580, %v576
    %v781 = vpack.c.b16 %v581, %v577
    %v782 = vpack.c.b16 %v586, %v582
    %v783 = vpack.c.b16 %v587, %v583
    %v784 = vpack.c.b16 %v588, %v584
    %v785 = vpack.c.b16 %v589, %v585
    %v786 = vpack.c.b16 %v594, %v590
    %v787 = vpack.c.b16 %v595, %v591
    %v788 = vpack.c.b16 %v596, %v592
    %v789 = vpack.c.b16 %v597, %v593
    %v790 = vpack.c.b16 %v602, %v598
    %v791 = vpack.c.b16 %v603, %v599
    %v792 = vpack.c.b16 %v604, %v600
    %v793 = vpack.c.b16 %v605, %v601
    %v794 = vpack.c.b16 %v610, %v606
    %v795 = vpack.c.b16 %v611, %v607
    %v796 = vpack.c.b16 %v612, %v608
    %v797 = vpack.c.b16 %v613, %v609
    %v798 = vpack.c.b16 %v618, %v614
    %v799 = vpack.c.b16 %v619, %v615
    %v800 = vpack.c.b16 %v620, %v616
    %v801 = vpack.c.b16 %v621, %v617
    %v802 = vpack.c.b16 %v626, %v622
    %v803 = vpack.c.b16 %v627, %v623
    %v804 = vpack.c.b16 %v628, %v624
    %v805 = vpack.c.b16 %v629, %v625
    %v806 = vpack.c.b16 %v634, %v630
    %v807 = vpack.c.b16 %v635, %v631
    %v808 = vpack.c.b16 %v636, %v632
    %v809 = vpack.c.b16 %v637, %v633
    %v810 = vpack.c.b16 %v642, %v638
    %v811 = vpack.c.b16 %v643, %v639
    %v812 = vpack.c.b16 %v644, %v640
    %v813 = vpack.c.b16 %v645, %v641
    %v814 = vpack.c.b16 %v650, %v646
    %v815 = vpack.c.b16 %v651, %v647
    %v816 = vpack.c.b16 %v652, %v648
    %v817 = vpack.c.b16 %v653, %v649
    %v818 = vpack.c.b16 %v658, %v654
    %v819 = vpack.c.b16 %v659, %v655
    %v820 = vpack.c.b16 %v660, %v656
    %v821 = vpack.c.b16 %v661, %v657
    %v822 = vpack.c.b16 %v666, %v662
    %v823 = vpack.c.b16 %v667, %v663
    %v824 = vpack.c.b16 %v668, %v664
    %v825 = vpack.c.b16 %v669, %v665
    %v826 = vpack.c.b16 %v674, %v670
    %v827 = vpack.c.b16 %v675, %v671
    %v828 = vpack.c.b16 %v676, %v672
    %v829 = vpack.c.b16 %v677, %v673
    %v830 = vpack.c.b16 %v682, %v678
    %v831 = vpack.c.b16 %v683, %v679
    %v832 = vpack.c.b16 %v684, %v680
    %v833 = vpack.c.b16 %v685, %v681
    %v834 = vpack.c.b16 %v690, %v686
    %v835 = vpack.c.b16 %v691, %v687
    %v836 = vpack.c.b16 %v692, %v688
    %v837 = vpack.c.b16 %v693, %v689
    %v838 = vpack.c.b16 %v698, %v694
    %v839 = vpack.c.b16 %v699, %v695
    %v840 = vpack.c.b16 %v700, %v696
    %v841 = vpack.c.b16 %v701, %v697
    %v842 = vpack.c.b16 %v706, %v702
    %v843 = vpack.c.b16 %v707, %v703
    %v844 = vpack.c.b16 %v708, %v704
    %v845 = vpack.c.b16 %v709, %v705
    %v846 = vpack.c.b16 %v714, %v710
    %v847 = vpack.c.b16 %v715, %v711
    %v848 = vpack.c.b16 %v716, %v712
    %v849 = vpack.c.b16 %v717, %v713
    %v850 = vpack.c.b16 %v722, %v718
    %v851 = vpack.c.b16 %v723, %v719
    %v852 = vpack.c.b16 %v724, %v720
    %v853 = vpack.c.b16 %v725, %v721
    %982 = vmatprep.subr.bf16.mxu0 %v727
    %983 = vmatpush1.bf16.msra.mxu0 %v726
    %984 = vmatprep.subr.bf16.mxu0 %v731
    %985 = vmatpush1.bf16.msra.mxu0 %v730
    %986 = vmatprep.subr.bf16.mxu0 %v735
    %987 = vmatpush1.bf16.msra.mxu0 %v734
    %988 = vmatprep.subr.bf16.mxu0 %v739
    %989 = vmatpush1.bf16.msra.mxu0 %v738
    %990 = vmatprep.subr.bf16.mxu0 %v743
    %991 = vmatpush1.bf16.msra.mxu0 %v742
    %992 = vmatprep.subr.bf16.mxu0 %v747
    %993 = vmatpush1.bf16.msra.mxu0 %v746
    %994 = vmatprep.subr.bf16.mxu0 %v751
    %995 = vmatpush1.bf16.msra.mxu0 %v750
    %996 = vmatprep.subr.bf16.mxu0 %v755
    %997 = vmatpush1.bf16.msra.mxu0 %v754
    %998 = vmatprep.subr.bf16.mxu0 %v759
    %999 = vmatpush1.bf16.msra.mxu0 %v758
    %1000 = vmatprep.subr.bf16.mxu0 %v763
    %1001 = vmatpush1.bf16.msra.mxu0 %v762
    %1002 = vmatprep.subr.bf16.mxu0 %v767
    %1003 = vmatpush1.bf16.msra.mxu0 %v766
    %1004 = vmatprep.subr.bf16.mxu0 %v771
    %1005 = vmatpush1.bf16.msra.mxu0 %v770
    %1006 = vmatprep.subr.bf16.mxu0 %v775
    %1007 = vmatpush1.bf16.msra.mxu0 %v774
    %1008 = vmatprep.subr.bf16.mxu0 %v779
    %1009 = vmatpush1.bf16.msra.mxu0 %v778
    %1010 = vmatprep.subr.bf16.mxu0 %v783
    %1011 = vmatpush1.bf16.msra.mxu0 %v782
    %1012 = vmatprep.subr.bf16.mxu0 %v787
    %1013 = vmatpush1.bf16.msra.mxu0 %v786
    %1014 = vmatprep.mubr.bf16.mxu0 %v318
    %1015 = vmatmul.mubr.bf16.gmra.mrb[0].mxu0 %v317
    %v1016 = vpop.f32.mrb[0].mxu0
    %v1017 = vadd.f32 %v325, %v1016
    %v1018 = vpop.f32.mrb[0].mxu0
    %v1019 = vadd.f32 %v329, %v1018
    %v1020 = vpop.f32.mrb[0].mxu0
    %v1021 = vpop.f32.mrb[0].mxu0
    %1022 = vdwg.mxu0
    %1023 = vmatprep.subr.bf16.mxu0 %v791
    %1024 = vmatpush1.bf16.msra.mxu0 %v790
    %1025 = vmatprep.subr.bf16.mxu0 %v795
    %1026 = vmatpush1.bf16.msra.mxu0 %v794
    %1027 = vmatprep.subr.bf16.mxu0 %v799
    %1028 = vmatpush1.bf16.msra.mxu0 %v798
    %1029 = vmatprep.subr.bf16.mxu0 %v803
    %1030 = vmatpush1.bf16.msra.mxu0 %v802
    %1031 = vmatprep.subr.bf16.mxu0 %v807
    %1032 = vmatpush1.bf16.msra.mxu0 %v806
    %1033 = vmatprep.subr.bf16.mxu0 %v811
    %1034 = vmatpush1.bf16.msra.mxu0 %v810
    %1035 = vmatprep.subr.bf16.mxu0 %v815
    %1036 = vmatpush1.bf16.msra.mxu0 %v814
    %1037 = vmatprep.subr.bf16.mxu0 %v819
    %1038 = vmatpush1.bf16.msra.mxu0 %v818
    %1039 = vmatprep.subr.bf16.mxu0 %v823
    %1040 = vmatpush1.bf16.msra.mxu0 %v822
    %1041 = vmatprep.subr.bf16.mxu0 %v827
    %1042 = vmatpush1.bf16.msra.mxu0 %v826
    %1043 = vmatprep.subr.bf16.mxu0 %v831
    %1044 = vmatpush1.bf16.msra.mxu0 %v830
    %1045 = vmatprep.subr.bf16.mxu0 %v835
    %1046 = vmatpush1.bf16.msra.mxu0 %v834
    %1047 = vmatprep.subr.bf16.mxu0 %v839
    %1048 = vmatpush1.bf16.msra.mxu0 %v838
    %1049 = vmatprep.subr.bf16.mxu0 %v843
    %1050 = vmatpush1.bf16.msra.mxu0 %v842
    %1051 = vmatprep.subr.bf16.mxu0 %v847
    %1052 = vmatpush1.bf16.msra.mxu0 %v846
    %1053 = vmatprep.subr.bf16.mxu0 %v851
    %1054 = vmatpush1.bf16.msra.mxu0 %v850
    %1055 = vmatprep.mubr.bf16.mxu0 %v320
    %1056 = vmatmul.mubr.bf16.gmra.mrb[0].mxu0 %v319
    %v1057 = vpop.f32.mrb[0].mxu0
    %v1058 = vadd.f32 %v1017, %v1057
    %v1059 = vpop.f32.mrb[0].mxu0
    %v1060 = vadd.f32 %v1019, %v1059
    %v1061 = vpop.f32.mrb[0].mxu0
    %v1062 = vpop.f32.mrb[0].mxu0
    %1063 = vdwg.mxu0
    %1064 = vmatprep.subr.bf16.mxu0 %v729
    %1065 = vmatpush1.bf16.msra.mxu0 %v728
    %1066 = vmatprep.subr.bf16.mxu0 %v733
    %1067 = vmatpush1.bf16.msra.mxu0 %v732
    %1068 = vmatprep.subr.bf16.mxu0 %v737
    %1069 = vmatpush1.bf16.msra.mxu0 %v736
    %1070 = vmatprep.subr.bf16.mxu0 %v741
    %1071 = vmatpush1.bf16.msra.mxu0 %v740
    %1072 = vmatprep.subr.bf16.mxu0 %v745
    %1073 = vmatpush1.bf16.msra.mxu0 %v744
    %1074 = vmatprep.subr.bf16.mxu0 %v749
    %1075 = vmatpush1.bf16.msra.mxu0 %v748
    %1076 = vmatprep.subr.bf16.mxu0 %v753
    %1077 = vmatpush1.bf16.msra.mxu0 %v752
    %1078 = vmatprep.subr.bf16.mxu0 %v757
    %1079 = vmatpush1.bf16.msra.mxu0 %v756
    %1080 = vmatprep.subr.bf16.mxu0 %v761
    %1081 = vmatpush1.bf16.msra.mxu0 %v760
    %1082 = vmatprep.subr.bf16.mxu0 %v765
    %1083 = vmatpush1.bf16.msra.mxu0 %v764
    %1084 = vmatprep.subr.bf16.mxu0 %v769
    %1085 = vmatpush1.bf16.msra.mxu0 %v768
    %1086 = vmatprep.subr.bf16.mxu0 %v773
    %1087 = vmatpush1.bf16.msra.mxu0 %v772
    %1088 = vmatprep.subr.bf16.mxu0 %v777
    %1089 = vmatpush1.bf16.msra.mxu0 %v776
    %1090 = vmatprep.subr.bf16.mxu0 %v781
    %1091 = vmatpush1.bf16.msra.mxu0 %v780
    %1092 = vmatprep.subr.bf16.mxu0 %v785
    %1093 = vmatpush1.bf16.msra.mxu0 %v784
    %1094 = vmatprep.subr.bf16.mxu0 %v789
    %1095 = vmatpush1.bf16.msra.mxu0 %v788
    %1096 = vmatprep.mubr.bf16.mxu0 %v318
    %1097 = vmatmul.mubr.bf16.gmra.mrb[0].mxu0 %v317
    %v1098 = vpop.f32.mrb[0].mxu0
    %v1099 = vadd.f32 %v333, %v1098
    %v1100 = vpop.f32.mrb[0].mxu0
    %v1101 = vadd.f32 %v337, %v1100
    %v1102 = vpop.f32.mrb[0].mxu0
    %v1103 = vpop.f32.mrb[0].mxu0
    %1104 = vdwg.mxu0
    %1105 = vmatprep.subr.bf16.mxu0 %v793
    %1106 = vmatpush1.bf16.msra.mxu0 %v792
    %1107 = vmatprep.subr.bf16.mxu0 %v797
    %1108 = vmatpush1.bf16.msra.mxu0 %v796
    %1109 = vmatprep.subr.bf16.mxu0 %v801
    %1110 = vmatpush1.bf16.msra.mxu0 %v800
    %1111 = vmatprep.subr.bf16.mxu0 %v805
    %1112 = vmatpush1.bf16.msra.mxu0 %v804
    %1113 = vmatprep.subr.bf16.mxu0 %v809
    %1114 = vmatpush1.bf16.msra.mxu0 %v808
    %1115 = vmatprep.subr.bf16.mxu0 %v813
    %1116 = vmatpush1.bf16.msra.mxu0 %v812
    %1117 = vmatprep.subr.bf16.mxu0 %v817
    %1118 = vmatpush1.bf16.msra.mxu0 %v816
    %1119 = vmatprep.subr.bf16.mxu0 %v821
    %1120 = vmatpush1.bf16.msra.mxu0 %v820
    %1121 = vmatprep.subr.bf16.mxu0 %v825
    %1122 = vmatpush1.bf16.msra.mxu0 %v824
    %1123 = vmatprep.subr.bf16.mxu0 %v829
    %1124 = vmatpush1.bf16.msra.mxu0 %v828
    %1125 = vmatprep.subr.bf16.mxu0 %v833
    %1126 = vmatpush1.bf16.msra.mxu0 %v832
    %1127 = vmatprep.subr.bf16.mxu0 %v837
    %1128 = vmatpush1.bf16.msra.mxu0 %v836
    %1129 = vmatprep.subr.bf16.mxu0 %v841
    %1130 = vmatpush1.bf16.msra.mxu0 %v840
    %1131 = vmatprep.subr.bf16.mxu0 %v845
    %1132 = vmatpush1.bf16.msra.mxu0 %v844
    %1133 = vmatprep.subr.bf16.mxu0 %v849
    %1134 = vmatpush1.bf16.msra.mxu0 %v848
    %1135 = vmatprep.subr.bf16.mxu0 %v853
    %1136 = vmatpush1.bf16.msra.mxu0 %v852
    %1137 = vmatprep.mubr.bf16.mxu0 %v320
    %1138 = vmatmul.mubr.bf16.gmra.mrb[0].mxu0 %v319
    %v1139 = vpop.f32.mrb[0].mxu0
    %v1140 = vadd.f32 %v1099, %v1139
    %v1141 = vpop.f32.mrb[0].mxu0
    %v1142 = vadd.f32 %v1101, %v1141
    %v1143 = vpop.f32.mrb[0].mxu0
    %v1144 = vpop.f32.mrb[0].mxu0
    %1145 = vdwg.mxu0
    %vm1146 = vcmp.gt.f32.partialorder %v1058, 0.0
    %vm1147 = vcmp.gt.f32.partialorder %v1060, 0.0
    %vm1148 = vcmp.gt.f32.partialorder %v1140, 0.0
    %vm1149 = vcmp.gt.f32.partialorder %v1142, 0.0
    %v1150 = vmul.f32 %v1058, 0.05
    %v1151 = vmul.f32 %v1060, 0.05
    %v1152 = vmul.f32 %v1140, 0.05
    %v1153 = vmul.f32 %v1142, 0.05
    %v1154 = vsel %vm1146, %v1058, %v1150
    %v1155 = vsel %vm1147, %v1060, %v1151
    %v1156 = vsel %vm1148, %v1140, %v1152
    %v1157 = vsel %vm1149, %v1142, %v1153
    %v1158 = vld [vmem:[%s5] sm:$0xf]
    %v1159 = vld [vmem:[%s5 + $0x4] sm:$0xf]
    %v1160 = vld [vmem:[%s5 + $0x8] sm:$0xf]
    %v1161 = vld [vmem:[%s5 + $0xc] sm:$0xf]
    %v1162 = vld [vmem:[%s5 + $0x10] sm:$0xf]
    %v1163 = vld [vmem:[%s5 + $0x14] sm:$0xf]
    %v1164 = vld [vmem:[%s5 + $0x18] sm:$0xf]
    %v1165 = vld [vmem:[%s5 + $0x1c] sm:$0xf]
    %v1166 = vld [vmem:[%s5 + $0x20] sm:$0xf]
    %v1167 = vld [vmem:[%s5 + $0x24] sm:$0xf]
    %v1168 = vld [vmem:[%s5 + $0x28] sm:$0xf]
    %v1169 = vld [vmem:[%s5 + $0x2c] sm:$0xf]
    %v1170 = vld [vmem:[%s5 + $0x30] sm:$0xf]
    %v1171 = vld [vmem:[%s5 + $0x34] sm:$0xf]
    %v1172 = vld [vmem:[%s5 + $0x38] sm:$0xf]
    %v1173 = vld [vmem:[%s5 + $0x3c] sm:$0xf]
    %v1174 = vld [vmem:[%s5 + $0x40] sm:$0xf]
    %v1175 = vld [vmem:[%s5 + $0x44] sm:$0xf]
    %v1176 = vld [vmem:[%s5 + $0x48] sm:$0xf]
    %v1177 = vld [vmem:[%s5 + $0x4c] sm:$0xf]
    %v1178 = vld [vmem:[%s5 + $0x50] sm:$0xf]
    %v1179 = vld [vmem:[%s5 + $0x54] sm:$0xf]
    %v1180 = vld [vmem:[%s5 + $0x58] sm:$0xf]
    %v1181 = vld [vmem:[%s5 + $0x5c] sm:$0xf]
    %v1182 = vld [vmem:[%s5 + $0x60] sm:$0xf]
    %v1183 = vld [vmem:[%s5 + $0x64] sm:$0xf]
    %v1184 = vld [vmem:[%s5 + $0x68] sm:$0xf]
    %v1185 = vld [vmem:[%s5 + $0x6c] sm:$0xf]
    %v1186 = vld [vmem:[%s5 + $0x70] sm:$0xf]
    %v1187 = vld [vmem:[%s5 + $0x74] sm:$0xf]
    %v1188 = vld [vmem:[%s5 + $0x78] sm:$0xf]
    %v1189 = vld [vmem:[%s5 + $0x7c] sm:$0xf]
    %v1190 = vld [vmem:[%s5 + $0x80] sm:$0xf]
    %v1191 = vld [vmem:[%s5 + $0x84] sm:$0xf]
    %v1192 = vld [vmem:[%s5 + $0x88] sm:$0xf]
    %v1193 = vld [vmem:[%s5 + $0x8c] sm:$0xf]
    %v1194 = vld [vmem:[%s5 + $0x90] sm:$0xf]
    %v1195 = vld [vmem:[%s5 + $0x94] sm:$0xf]
    %v1196 = vld [vmem:[%s5 + $0x98] sm:$0xf]
    %v1197 = vld [vmem:[%s5 + $0x9c] sm:$0xf]
    %v1198 = vld [vmem:[%s5 + $0xa0] sm:$0xf]
    %v1199 = vld [vmem:[%s5 + $0xa4] sm:$0xf]
    %v1200 = vld [vmem:[%s5 + $0xa8] sm:$0xf]
    %v1201 = vld [vmem:[%s5 + $0xac] sm:$0xf]
    %v1202 = vld [vmem:[%s5 + $0xb0] sm:$0xf]
    %v1203 = vld [vmem:[%s5 + $0xb4] sm:$0xf]
    %v1204 = vld [vmem:[%s5 + $0xb8] sm:$0xf]
    %v1205 = vld [vmem:[%s5 + $0xbc] sm:$0xf]
    %v1206 = vld [vmem:[%s5 + $0xc0] sm:$0xf]
    %v1207 = vld [vmem:[%s5 + $0xc4] sm:$0xf]
    %v1208 = vld [vmem:[%s5 + $0xc8] sm:$0xf]
    %v1209 = vld [vmem:[%s5 + $0xcc] sm:$0xf]
    %v1210 = vld [vmem:[%s5 + $0xd0] sm:$0xf]
    %v1211 = vld [vmem:[%s5 + $0xd4] sm:$0xf]
    %v1212 = vld [vmem:[%s5 + $0xd8] sm:$0xf]
    %v1213 = vld [vmem:[%s5 + $0xdc] sm:$0xf]
    %v1214 = vld [vmem:[%s5 + $0xe0] sm:$0xf]
    %v1215 = vld [vmem:[%s5 + $0xe4] sm:$0xf]
    %v1216 = vld [vmem:[%s5 + $0xe8] sm:$0xf]
    %v1217 = vld [vmem:[%s5 + $0xec] sm:$0xf]
    %v1218 = vld [vmem:[%s5 + $0xf0] sm:$0xf]
    %v1219 = vld [vmem:[%s5 + $0xf4] sm:$0xf]
    %v1220 = vld [vmem:[%s5 + $0xf8] sm:$0xf]
    %v1221 = vld [vmem:[%s5 + $0xfc] sm:$0xf]
    %v1222 = vld [vmem:[%s6] sm:$0x1]
    %v1223 = vpack.c.bf16 %v1154, %v1154
    %v1224 = vpack.c.bf16 %v1155, %v1155
    %v1225 = vpack.c.bf16 %v1156, %v1156
    %v1226 = vpack.c.bf16 %v1157, %v1157
    %v1228 = vlaneseq
    %v1229 = vshrl.u32 %v1228, 7
    %v1230 = vsub.s32 0, %v1229
    %v1231 = vrot.slane %v1222, %v1230
    %v1297 = vunpack.c.l.b16 %v1158
    %v1298 = vunpack.c.l.b16 %v1159
    %v1299 = vunpack.c.l.b16 %v1160
    %v1300 = vunpack.c.l.b16 %v1161
    %v1301 = vunpack.c.l.b16 %v1162
    %v1302 = vunpack.c.l.b16 %v1163
    %v1303 = vunpack.c.l.b16 %v1164
    %v1304 = vunpack.c.l.b16 %v1165
    %v1305 = vunpack.c.l.b16 %v1166
    %v1306 = vunpack.c.l.b16 %v1167
    %v1307 = vunpack.c.l.b16 %v1168
    %v1308 = vunpack.c.l.b16 %v1169
    %v1309 = vunpack.c.l.b16 %v1170
    %v1310 = vunpack.c.l.b16 %v1171
    %v1311 = vunpack.c.l.b16 %v1172
    %v1312 = vunpack.c.l.b16 %v1173
    %v1313 = vunpack.c.l.b16 %v1174
    %v1314 = vunpack.c.l.b16 %v1175
    %v1315 = vunpack.c.l.b16 %v1176
    %v1316 = vunpack.c.l.b16 %v1177
    %v1317 = vunpack.c.l.b16 %v1178
    %v1318 = vunpack.c.l.b16 %v1179
    %v1319 = vunpack.c.l.b16 %v1180
    %v1320 = vunpack.c.l.b16 %v1181
    %v1321 = vunpack.c.l.b16 %v1182
    %v1322 = vunpack.c.l.b16 %v1183
    %v1323 = vunpack.c.l.b16 %v1184
    %v1324 = vunpack.c.l.b16 %v1185
    %v1325 = vunpack.c.l.b16 %v1186
    %v1326 = vunpack.c.l.b16 %v1187
    %v1327 = vunpack.c.l.b16 %v1188
    %v1328 = vunpack.c.l.b16 %v1189
    %v1329 = vunpack.c.l.b16 %v1190
    %v1330 = vunpack.c.l.b16 %v1191
    %v1331 = vunpack.c.l.b16 %v1192
    %v1332 = vunpack.c.l.b16 %v1193
    %v1333 = vunpack.c.l.b16 %v1194
    %v1334 = vunpack.c.l.b16 %v1195
    %v1335 = vunpack.c.l.b16 %v1196
    %v1336 = vunpack.c.l.b16 %v1197
    %v1337 = vunpack.c.l.b16 %v1198
    %v1338 = vunpack.c.l.b16 %v1199
    %v1339 = vunpack.c.l.b16 %v1200
    %v1340 = vunpack.c.l.b16 %v1201
    %v1341 = vunpack.c.l.b16 %v1202
    %v1342 = vunpack.c.l.b16 %v1203
    %v1343 = vunpack.c.l.b16 %v1204
    %v1344 = vunpack.c.l.b16 %v1205
    %v1345 = vunpack.c.l.b16 %v1206
    %v1346 = vunpack.c.l.b16 %v1207
    %v1347 = vunpack.c.l.b16 %v1208
    %v1348 = vunpack.c.l.b16 %v1209
    %v1349 = vunpack.c.l.b16 %v1210
    %v1350 = vunpack.c.l.b16 %v1211
    %v1351 = vunpack.c.l.b16 %v1212
    %v1352 = vunpack.c.l.b16 %v1213
    %v1353 = vunpack.c.l.b16 %v1214
    %v1354 = vunpack.c.l.b16 %v1215
    %v1355 = vunpack.c.l.b16 %v1216
    %v1356 = vunpack.c.l.b16 %v1217
    %v1357 = vunpack.c.l.b16 %v1218
    %v1358 = vunpack.c.l.b16 %v1219
    %v1359 = vunpack.c.l.b16 %v1220
    %v1360 = vunpack.c.l.b16 %v1221
    %v1361 = vpack.c.b16 %v1298, %v1297
    %v1362 = vpack.c.b16 %v1300, %v1299
    %v1363 = vpack.c.b16 %v1302, %v1301
    %v1364 = vpack.c.b16 %v1304, %v1303
    %v1365 = vpack.c.b16 %v1306, %v1305
    %v1366 = vpack.c.b16 %v1308, %v1307
    %v1367 = vpack.c.b16 %v1310, %v1309
    %v1368 = vpack.c.b16 %v1312, %v1311
    %v1369 = vpack.c.b16 %v1314, %v1313
    %v1370 = vpack.c.b16 %v1316, %v1315
    %v1371 = vpack.c.b16 %v1318, %v1317
    %v1372 = vpack.c.b16 %v1320, %v1319
    %v1373 = vpack.c.b16 %v1322, %v1321
    %v1374 = vpack.c.b16 %v1324, %v1323
    %v1375 = vpack.c.b16 %v1326, %v1325
    %v1376 = vpack.c.b16 %v1328, %v1327
    %v1377 = vpack.c.b16 %v1330, %v1329
    %v1378 = vpack.c.b16 %v1332, %v1331
    %v1379 = vpack.c.b16 %v1334, %v1333
    %v1380 = vpack.c.b16 %v1336, %v1335
    %v1381 = vpack.c.b16 %v1338, %v1337
    %v1382 = vpack.c.b16 %v1340, %v1339
    %v1383 = vpack.c.b16 %v1342, %v1341
    %v1384 = vpack.c.b16 %v1344, %v1343
    %v1385 = vpack.c.b16 %v1346, %v1345
    %v1386 = vpack.c.b16 %v1348, %v1347
    %v1387 = vpack.c.b16 %v1350, %v1349
    %v1388 = vpack.c.b16 %v1352, %v1351
    %v1389 = vpack.c.b16 %v1354, %v1353
    %v1390 = vpack.c.b16 %v1356, %v1355
    %v1391 = vpack.c.b16 %v1358, %v1357
    %v1392 = vpack.c.b16 %v1360, %v1359
    %1425 = vmatprep.subr.bf16.mxu0 0
    %1426 = vmatpush1.bf16.msra.mxu0 %v1361
    %1427 = vmatprep.subr.bf16.mxu0 0
    %1428 = vmatpush1.bf16.msra.mxu0 %v1362
    %1429 = vmatprep.subr.bf16.mxu0 0
    %1430 = vmatpush1.bf16.msra.mxu0 %v1363
    %1431 = vmatprep.subr.bf16.mxu0 0
    %1432 = vmatpush1.bf16.msra.mxu0 %v1364
    %1433 = vmatprep.subr.bf16.mxu0 0
    %1434 = vmatpush1.bf16.msra.mxu0 %v1365
    %1435 = vmatprep.subr.bf16.mxu0 0
    %1436 = vmatpush1.bf16.msra.mxu0 %v1366
    %1437 = vmatprep.subr.bf16.mxu0 0
    %1438 = vmatpush1.bf16.msra.mxu0 %v1367
    %1439 = vmatprep.subr.bf16.mxu0 0
    %1440 = vmatpush1.bf16.msra.mxu0 %v1368
    %1441 = vmatprep.subr.bf16.mxu0 0
    %1442 = vmatpush1.bf16.msra.mxu0 %v1369
    %1443 = vmatprep.subr.bf16.mxu0 0
    %1444 = vmatpush1.bf16.msra.mxu0 %v1370
    %1445 = vmatprep.subr.bf16.mxu0 0
    %1446 = vmatpush1.bf16.msra.mxu0 %v1371
    %1447 = vmatprep.subr.bf16.mxu0 0
    %1448 = vmatpush1.bf16.msra.mxu0 %v1372
    %1449 = vmatprep.subr.bf16.mxu0 0
    %1450 = vmatpush1.bf16.msra.mxu0 %v1373
    %1451 = vmatprep.subr.bf16.mxu0 0
    %1452 = vmatpush1.bf16.msra.mxu0 %v1374
    %1453 = vmatprep.subr.bf16.mxu0 0
    %1454 = vmatpush1.bf16.msra.mxu0 %v1375
    %1455 = vmatprep.subr.bf16.mxu0 0
    %1456 = vmatpush1.bf16.msra.mxu0 %v1376
    %1457 = vmatprep.mubr.bf16.mxu0 %v1224
    %1458 = vmatmul.mubr.bf16.gmra.mrb[0].mxu0 %v1223
    %v1459 = vpop.f32.mrb[0].mxu0
    %v1460 = vadd.f32 %v1231, %v1459
    %v1461 = vpop.f32.mrb[0].mxu0
    %v1462 = vpop.f32.mrb[0].mxu0
    %v1463 = vpop.f32.mrb[0].mxu0
    %1464 = vdwg.mxu0
    %1465 = vmatprep.subr.bf16.mxu0 0
    %1466 = vmatpush1.bf16.msra.mxu0 %v1377
    %1467 = vmatprep.subr.bf16.mxu0 0
    %1468 = vmatpush1.bf16.msra.mxu0 %v1378
    %1469 = vmatprep.subr.bf16.mxu0 0
    %1470 = vmatpush1.bf16.msra.mxu0 %v1379
    %1471 = vmatprep.subr.bf16.mxu0 0
    %1472 = vmatpush1.bf16.msra.mxu0 %v1380
    %1473 = vmatprep.subr.bf16.mxu0 0
    %1474 = vmatpush1.bf16.msra.mxu0 %v1381
    %1475 = vmatprep.subr.bf16.mxu0 0
    %1476 = vmatpush1.bf16.msra.mxu0 %v1382
    %1477 = vmatprep.subr.bf16.mxu0 0
    %1478 = vmatpush1.bf16.msra.mxu0 %v1383
    %1479 = vmatprep.subr.bf16.mxu0 0
    %1480 = vmatpush1.bf16.msra.mxu0 %v1384
    %1481 = vmatprep.subr.bf16.mxu0 0
    %1482 = vmatpush1.bf16.msra.mxu0 %v1385
    %1483 = vmatprep.subr.bf16.mxu0 0
    %1484 = vmatpush1.bf16.msra.mxu0 %v1386
    %1485 = vmatprep.subr.bf16.mxu0 0
    %1486 = vmatpush1.bf16.msra.mxu0 %v1387
    %1487 = vmatprep.subr.bf16.mxu0 0
    %1488 = vmatpush1.bf16.msra.mxu0 %v1388
    %1489 = vmatprep.subr.bf16.mxu0 0
    %1490 = vmatpush1.bf16.msra.mxu0 %v1389
    %1491 = vmatprep.subr.bf16.mxu0 0
    %1492 = vmatpush1.bf16.msra.mxu0 %v1390
    %1493 = vmatprep.subr.bf16.mxu0 0
    %1494 = vmatpush1.bf16.msra.mxu0 %v1391
    %1495 = vmatprep.subr.bf16.mxu0 0
    %1496 = vmatpush1.bf16.msra.mxu0 %v1392
    %1497 = vmatprep.mubr.bf16.mxu0 %v1226
    %1498 = vmatmul.mubr.bf16.gmra.mrb[0].mxu0 %v1225
    %v1499 = vpop.f32.mrb[0].mxu0
    %v1500 = vadd.f32 %v1460, %v1499
    %v1501 = vpop.f32.mrb[0].mxu0
    %v1502 = vpop.f32.mrb[0].mxu0
    %v1503 = vpop.f32.mrb[0].mxu0
    %1504 = vdwg.mxu0
    %1505 = vst.msk [vmem:[#allocation5] sm:$0xff] %vm90, %v1500
    // Predicated region
    $region34: #{tpu_custom_call.1} parent=1 // pred_check
      _
    $region35: #{tpu_custom_call.1} parent=1 // pred_check_branch
      %1507 = sbr.rel (0) target = $region37
    $region36: #{tpu_custom_call.1} parent=1 // pred_region
      %s1509 = ssub.s32 128, 128
      %1510 = vsyncadd [#allocation4], %s1509
      %s1512 = sshll.u32 [#allocation5], 4
      %s1513 = int_to_ptr.vmem [resolvable:$true] %s1512
      %1515 = dma.vmem_to_hbm [thread:$0]  %s1513, 128, %s7, [#allocation4]
    $region37: #{tpu_custom_call.1} parent=1 // pred_fallthru
      _
    // Predicated region
    $region38: #{tpu_custom_call.1} parent=1 // pred_check
      _
    $region39: #{tpu_custom_call.1} parent=1 // pred_check_branch
      %1517 = sbr.rel (0) target = $region41
    $region40: #{tpu_custom_call.1} parent=1 // pred_region
      %1518 = dma.done [#allocation4], 128
    $region41: #{tpu_custom_call.1} parent=1 // pred_fallthru
      _
    %1519 = vsyncpa [#allocation3], 1
    %1520 = vsyncpa [#allocation4], 1

</llo_original>
